<compile_context>
chip_gen: v6e
topology: v6e:2x2x1
jax: 0.10.0
libtpu: 0.0.40
codegen_flags: <defaults>
</compile_context>

<pallas_src>
import jax
import jax.numpy as jnp
from jax.experimental import pallas as pl
from jax.experimental.pallas import tpu as pltpu

# small shapes consistent with the module (dim_ff = transformer hidden dim)
B = 2          # batch
S = 8          # sequence length
DIM_FF = 64    # dim_ff (in_features == out_features for both layers)


# ------------------------------------------------------------------
# Fused kernel: Linear -> ReLU -> Linear  (one M-tile per grid step)
# ------------------------------------------------------------------
def ffn_kernel(x_ref, w1_ref, b1_ref, w2_ref, b2_ref, o_ref):
    # x tile: [tm, F] (caller dtype); w1/w2: [F, F] bf16 (pre-transposed, y = x@W+b)
    # b1/b2: [1, F] f32
    x = x_ref[...].astype(w1_ref.dtype)                    # bf16 feed for the MXU
    h = jnp.dot(x, w1_ref[...], preferred_element_type=jnp.float32)
    h = jnp.maximum(h + b1_ref[...], 0.0)                  # bias + ReLU in f32 (VPU)
    y = jnp.dot(h.astype(w2_ref.dtype), w2_ref[...],
                preferred_element_type=jnp.float32)
    o_ref[...] = (y + b2_ref[...]).astype(o_ref.dtype)


# ------------------------------------------------------------------
# Wrapper
# ------------------------------------------------------------------
def _round_up(x, m):
    return ((x + m - 1) // m) * m


def feed_forward_block(params, x, *, tm_target=512):
    """x: [B, S, DIM_FF]  ->  [B, S, DIM_FF]"""
    b, s, f = x.shape
    m = b * s
    x2d = x.reshape(m, f)                      # contiguous reshape: free, no cast

    # Tile the flattened M axis; big tiles (512 rows ~= 128 KiB of f32 x) are
    # cheap everywhere incl. v7x's 64 MiB VMEM. For tiny M, one padded tile.
    tm = tm_target if m >= tm_target else _round_up(m, 16)
    m_pad = _round_up(m, tm)
    if m_pad != m:
        x2d = jnp.pad(x2d, ((0, m_pad - m), (0, 0)))

    w1, b1, w2, b2 = params["w1"], params["b1"], params["w2"], params["b2"]
    out_dtype = x.dtype

    flops = 2 * 2 * m_pad * f * f              # two [m,f]x[f,f] matmuls
    bytes_accessed = (
        x2d.size * x2d.dtype.itemsize
        + m_pad * f * jnp.dtype(out_dtype).itemsize
        + w1.size * w1.dtype.itemsize + w2.size * w2.dtype.itemsize
        + b1.size * b1.dtype.itemsize + b2.size * b2.dtype.itemsize
    )

    out2d = pl.pallas_call(
        ffn_kernel,
        out_shape=jax.ShapeDtypeStruct((m_pad, f), out_dtype),
        grid=(m_pad // tm,),
        in_specs=[
            pl.BlockSpec((tm, f), lambda i: (i, 0)),   # x: tiled over M, pipelined
            pl.BlockSpec((f, f), lambda i: (0, 0)),    # w1: resident across tiles
            pl.BlockSpec((1, f), lambda i: (0, 0)),    # b1: resident
            pl.BlockSpec((f, f), lambda i: (0, 0)),    # w2: resident
            pl.BlockSpec((1, f), lambda i: (0, 0)),    # b2: resident
        ],
        out_specs=pl.BlockSpec((tm, f), lambda i: (i, 0)),
        compiler_params=pltpu.CompilerParams(
            dimension_semantics=("parallel",),         # shard M across v7x's 2 TCs
        ),
        cost_estimate=pl.CostEstimate(
            flops=flops, transcendentals=0, bytes_accessed=bytes_accessed),
    )(x2d, w1, b1, w2, b2)

    return out2d[:m].reshape(b, s, f)


def init_params(key):
    k1, k2, k3, k4 = jax.random.split(key, 4)
    scale = 1.0 / (DIM_FF ** 0.5)
    return {
        # weights stored as [in_features, out_features] (torch weight transposed),
        # bf16 so the MXU gets native passes and HBM/VMEM bytes are halved.
        "w1": (jax.random.normal(k1, (DIM_FF, DIM_FF), jnp.float32) * scale
               ).astype(jnp.bfloat16),
        "b1": jax.random.normal(k2, (1, DIM_FF), jnp.float32) * scale,
        "w2": (jax.random.normal(k3, (DIM_FF, DIM_FF), jnp.float32) * scale
               ).astype(jnp.bfloat16),
        "b2": jax.random.normal(k4, (1, DIM_FF), jnp.float32) * scale,
    }


def _reference(params, x):
    # pure-JAX reference of layer2(relu(layer1(x))) with the same bf16-in /
    # f32-accumulate numerics as the kernel.
    xb = x.astype(jnp.bfloat16)
    h = jnp.dot(xb, params["w1"], preferred_element_type=jnp.float32) + params["b1"][0]
    h = jnp.maximum(h, 0.0)
    y = (jnp.dot(h.astype(jnp.bfloat16), params["w2"],
                 preferred_element_type=jnp.float32) + params["b2"][0])
    return y.astype(x.dtype)


if __name__ == "__main__":
    key = jax.random.PRNGKey(0)
    kp, kx = jax.random.split(key)
    params = init_params(kp)
    x = jax.random.normal(kx, (B, S, DIM_FF), jnp.float32)

    out = jax.jit(lambda xx: feed_forward_block(params, xx))(x)
    jax.block_until_ready(out)

    assert out.shape == (B, S, DIM_FF)
    ref = _reference(params, x)
    assert jnp.allclose(out, ref, atol=1e-3, rtol=1e-3), "mismatch vs reference"
    print("KERNEL_OK")
</pallas_src>

<mosaic_0001>
module attributes {stable_mosaic.version = 11 : i64} {
  func.func @ffn_kernel(%arg0: i32, %arg1: memref<16x64xf32, #tpu.memory_space<vmem>>, %arg2: memref<64x64xbf16, #tpu.memory_space<vmem>>, %arg3: memref<1x64xf32, #tpu.memory_space<vmem>>, %arg4: memref<64x64xbf16, #tpu.memory_space<vmem>>, %arg5: memref<1x64xf32, #tpu.memory_space<vmem>>, %arg6: memref<16x64xf32, #tpu.memory_space<vmem>>) attributes {dimension_semantics = [#tpu.dimension_semantics<parallel>], iteration_bounds = array<i64: 1>, scalar_prefetch = 0 : i64, scratch_operands = 0 : i64, tpu.core_type = #tpu.core_type<tc>, window_params = [{transform_indices = @transform_0, window_bounds = array<i64: 16, 64>}, {pipeline_mode = #tpu.pipeline_mode<synchronous>, transform_indices = @transform_1, window_bounds = array<i64: 64, 64>}, {pipeline_mode = #tpu.pipeline_mode<synchronous>, transform_indices = @transform_2, window_bounds = array<i64: 1, 64>}, {pipeline_mode = #tpu.pipeline_mode<synchronous>, transform_indices = @transform_3, window_bounds = array<i64: 64, 64>}, {pipeline_mode = #tpu.pipeline_mode<synchronous>, transform_indices = @transform_4, window_bounds = array<i64: 1, 64>}, {transform_indices = @transform_5, window_bounds = array<i64: 16, 64>}]} {
    %c0 = arith.constant 0 : index
    %c0_0 = arith.constant 0 : index
    %0 = vector.load %arg1[%c0, %c0_0] : memref<16x64xf32, #tpu.memory_space<vmem>>, vector<16x64xf32>
    %1 = arith.truncf %0 : vector<16x64xf32> to vector<16x64xbf16>
    %c0_1 = arith.constant 0 : index
    %c0_2 = arith.constant 0 : index
    %2 = vector.load %arg2[%c0_1, %c0_2] : memref<64x64xbf16, #tpu.memory_space<vmem>>, vector<64x64xbf16>
    %cst = arith.constant dense<0.000000e+00> : vector<16x64xf32>
    %3 = tpu.matmul %1, %2, %cst {dimension_numbers = #tpu.dot_dimension_numbers<[1], [0], [0], [1], [0, 0, 1, 1], [], []>} : vector<16x64xbf16>, vector<64x64xbf16>, vector<16x64xf32> -> vector<16x64xf32>
    %c0_3 = arith.constant 0 : index
    %c0_4 = arith.constant 0 : index
    %4 = vector.load %arg3[%c0_3, %c0_4] : memref<1x64xf32, #tpu.memory_space<vmem>>, vector<1x64xf32>
    %5 = vector.broadcast %4 : vector<1x64xf32> to vector<16x64xf32>
    %6 = arith.addf %3, %5 : vector<16x64xf32>
    %cst_5 = arith.constant 0.000000e+00 : f32
    %7 = vector.broadcast %cst_5 : f32 to vector<16x64xf32>
    %8 = arith.maximumf %6, %7 : vector<16x64xf32>
    %9 = arith.truncf %8 : vector<16x64xf32> to vector<16x64xbf16>
    %c0_6 = arith.constant 0 : index
    %c0_7 = arith.constant 0 : index
    %10 = vector.load %arg4[%c0_6, %c0_7] : memref<64x64xbf16, #tpu.memory_space<vmem>>, vector<64x64xbf16>
    %cst_8 = arith.constant dense<0.000000e+00> : vector<16x64xf32>
    %11 = tpu.matmul %9, %10, %cst_8 {dimension_numbers = #tpu.dot_dimension_numbers<[1], [0], [0], [1], [0, 0, 1, 1], [], []>} : vector<16x64xbf16>, vector<64x64xbf16>, vector<16x64xf32> -> vector<16x64xf32>
    %c0_9 = arith.constant 0 : index
    %c0_10 = arith.constant 0 : index
    %12 = vector.load %arg5[%c0_9, %c0_10] : memref<1x64xf32, #tpu.memory_space<vmem>>, vector<1x64xf32>
    %13 = vector.broadcast %12 : vector<1x64xf32> to vector<16x64xf32>
    %14 = arith.addf %11, %13 : vector<16x64xf32>
    %c0_11 = arith.constant 0 : index
    %c0_12 = arith.constant 0 : index
    %15 = vector.load %arg6[%c0_11, %c0_12] : memref<16x64xf32, #tpu.memory_space<vmem>>, vector<16x64xf32>
    tpu.vector_store %arg6[%c0_11, %c0_12], %14 {strides = array<i32>} : memref<16x64xf32, #tpu.memory_space<vmem>>, vector<16x64xf32>,
    return
  }
  func.func @transform_0(%arg0: i32) -> (i32, i32) {
    %c0_i32 = arith.constant 0 : i32
    %c0_i32_0 = arith.constant 0 : i32
    return %arg0, %c0_i32 : i32, i32
  }
  func.func @transform_1(%arg0: i32) -> (i32, i32) {
    %c0_i32 = arith.constant 0 : i32
    %c0_i32_0 = arith.constant 0 : i32
    %c0_i32_1 = arith.constant 0 : i32
    return %c0_i32, %c0_i32_0 : i32, i32
  }
  func.func @transform_2(%arg0: i32) -> (i32, i32) {
    %c0_i32 = arith.constant 0 : i32
    %c0_i32_0 = arith.constant 0 : i32
    %c0_i32_1 = arith.constant 0 : i32
    return %c0_i32, %c0_i32_0 : i32, i32
  }
  func.func @transform_3(%arg0: i32) -> (i32, i32) {
    %c0_i32 = arith.constant 0 : i32
    %c0_i32_0 = arith.constant 0 : i32
    %c0_i32_1 = arith.constant 0 : i32
    return %c0_i32, %c0_i32_0 : i32, i32
  }
  func.func @transform_4(%arg0: i32) -> (i32, i32) {
    %c0_i32 = arith.constant 0 : i32
    %c0_i32_0 = arith.constant 0 : i32
    %c0_i32_1 = arith.constant 0 : i32
    return %c0_i32, %c0_i32_0 : i32, i32
  }
  func.func @transform_5(%arg0: i32) -> (i32, i32) {
    %c0_i32 = arith.constant 0 : i32
    %c0_i32_0 = arith.constant 0 : i32
    return %arg0, %c0_i32 : i32, i32
  }
}

</mosaic_0001>

<llo_original>
// kernel: _lambda_.1
$region0: #{_lambda_.1}
  #allocation0 [shape = 'u32[]', space=smem, size = 0x4, offset = 0x4, fixed_abs, tag = 'smem constant byte address 0x4 - core index']
  #allocation1 [shape = 'u32[144,128]{1,0:T(1,128)}', space=vmem, size = 0x12000, scoped, tag = 'internal scratch']
  %s0 = inlined_call_operand.hbm [shape: f32[16,64], index: 0, kind: input, shape index: {}]
  %s1 = inlined_call_operand.hbm [shape: bf16[64,64], index: 1, kind: input, shape index: {}]
  %s2 = inlined_call_operand.vmem [shape: f32[1,64], index: 2, kind: input, shape index: {}]
  %s3 = inlined_call_operand.hbm [shape: bf16[64,64], index: 3, kind: input, shape index: {}]
  %s4 = inlined_call_operand.vmem [shape: f32[1,64], index: 4, kind: input, shape index: {}]
  %s5 = inlined_call_operand.hbm [shape: f32[16,64], index: 5, kind: output, shape index: {}]
  %s6 = sld [smem:[#allocation0]]
  $region42: #{_lambda_.1} parent=0
    _
  %s8 = ssub.s32 1, %s6
  %s9 = scalar_select 0, %s8, %s6
  $region1: #{_lambda_.1} parent=0
    #allocation2 [shape = 'u8[8192]{0}', space=vmem, size = 0x2000, scoped, tag = 'input window, operand 0, single buffered']
    #allocation3 [shape = 's32[1]{0}', space=sflag, size = 0x4, scoped, tag = 'scoped memory for _lambda_.1']
    #allocation4 [shape = 's32[1]{0}', space=sflag, size = 0x4, scoped, tag = 'scoped memory for _lambda_.1']
    #allocation5 [shape = 'u8[16384]{0}', space=vmem, size = 0x4000, scoped, tag = 'input window, operand 1, single buffered']
    #allocation6 [shape = 's32[1]{0}', space=sflag, size = 0x4, scoped, tag = 'scoped memory for _lambda_.1']
    #allocation7 [shape = 'u8[16384]{0}', space=vmem, size = 0x4000, scoped, tag = 'input window, operand 3, single buffered']
    #allocation8 [shape = 'u8[8192]{0}', space=vmem, size = 0x2000, scoped, tag = 'output window, operand 0, single buffered']
    %10 = vsyncpa [#allocation3], 0
    %11 = vsyncpa [#allocation6], 0
    %12 = vsyncpa [#allocation4], 0
    // Predicated region
    $region2: #{_lambda_.1} parent=1 // pred_check
      _
    $region3: #{_lambda_.1} parent=1 // pred_check_branch
      %14 = sbr.rel (0) target = $region5
    $region4: #{_lambda_.1} parent=1 // pred_region
      %s16 = ssub.s32 256, 256
      %17 = vsyncadd [#allocation3], %s16
      %s18 = sshll.u32 [#allocation2], 4
      %s19 = int_to_ptr.vmem [resolvable:$true] %s18
      %24 = dma.hbm_to_vmem [thread:$0]  %s0, 256, %s19, [#allocation3], 128, 128, 8
    $region5: #{_lambda_.1} parent=1 // pred_fallthru
      _
    // Predicated region
    $region6: #{_lambda_.1} parent=1 // pred_check
      _
    $region7: #{_lambda_.1} parent=1 // pred_check_branch
      %26 = sbr.rel (0) target = $region9
    $region8: #{_lambda_.1} parent=1 // pred_region
      %s28 = ssub.s32 512, 512
      %29 = vsyncadd [#allocation6], %s28
      %s30 = sshll.u32 [#allocation5], 4
      %s31 = int_to_ptr.vmem [resolvable:$true] %s30
      %36 = dma.hbm_to_vmem [thread:$0]  %s1, 512, %s31, [#allocation6], 64, 64, 4
    $region9: #{_lambda_.1} parent=1 // pred_fallthru
      _
    // Predicated region
    $region10: #{_lambda_.1} parent=1 // pred_check
      _
    $region11: #{_lambda_.1} parent=1 // pred_check_branch
      %38 = sbr.rel (0) target = $region13
    $region12: #{_lambda_.1} parent=1 // pred_region
      _
    $region13: #{_lambda_.1} parent=1 // pred_fallthru
      _
    // Predicated region
    $region14: #{_lambda_.1} parent=1 // pred_check
      _
    $region15: #{_lambda_.1} parent=1 // pred_check_branch
      %40 = sbr.rel (0) target = $region17
    $region16: #{_lambda_.1} parent=1 // pred_region
      %s42 = ssub.s32 512, 512
      %43 = vsyncadd [#allocation6], %s42
      %s44 = sshll.u32 [#allocation7], 4
      %s45 = int_to_ptr.vmem [resolvable:$true] %s44
      %50 = dma.hbm_to_vmem [thread:$0]  %s3, 512, %s45, [#allocation6], 64, 64, 4
    $region17: #{_lambda_.1} parent=1 // pred_fallthru
      _
    // Predicated region
    $region18: #{_lambda_.1} parent=1 // pred_check
      _
    $region19: #{_lambda_.1} parent=1 // pred_check_branch
      %52 = sbr.rel (0) target = $region21
    $region20: #{_lambda_.1} parent=1 // pred_region
      _
    $region21: #{_lambda_.1} parent=1 // pred_fallthru
      _
    // Predicated region
    $region22: #{_lambda_.1} parent=1 // pred_check
      _
    $region23: #{_lambda_.1} parent=1 // pred_check_branch
      %54 = sbr.rel (0) target = $region25
    $region24: #{_lambda_.1} parent=1 // pred_region
      %55 = dma.done [#allocation3], 256
    $region25: #{_lambda_.1} parent=1 // pred_fallthru
      _
    // Predicated region
    $region26: #{_lambda_.1} parent=1 // pred_check
      _
    $region27: #{_lambda_.1} parent=1 // pred_check_branch
      %57 = sbr.rel (0) target = $region29
    $region28: #{_lambda_.1} parent=1 // pred_region
      %58 = dma.done [#allocation6], 512
    $region29: #{_lambda_.1} parent=1 // pred_fallthru
      _
    // Predicated region
    $region30: #{_lambda_.1} parent=1 // pred_check
      _
    $region31: #{_lambda_.1} parent=1 // pred_check_branch
      %60 = sbr.rel (0) target = $region33
    $region32: #{_lambda_.1} parent=1 // pred_region
      %61 = dma.done [#allocation6], 512
    $region33: #{_lambda_.1} parent=1 // pred_fallthru
      _
    %v63 = vld [vmem:[#allocation2] sm:$0xff]
    %v64 = vld [vmem:[#allocation2 + $0x8] sm:$0xff]
    %v65 = vpack.c.bf16 %v64, %v63
    %v66 = vld [vmem:[#allocation5] sm:$0xf]
    %v67 = vld [vmem:[#allocation5 + $0x4] sm:$0xf]
    %v68 = vld [vmem:[#allocation5 + $0x8] sm:$0xf]
    %v69 = vld [vmem:[#allocation5 + $0xc] sm:$0xf]
    %v70 = vld [vmem:[#allocation5 + $0x10] sm:$0xf]
    %v71 = vld [vmem:[#allocation5 + $0x14] sm:$0xf]
    %v72 = vld [vmem:[#allocation5 + $0x18] sm:$0xf]
    %v73 = vld [vmem:[#allocation5 + $0x1c] sm:$0xf]
    %v74 = vld [vmem:[%s2] sm:$0x1]
    %v76 = vlaneseq
    %v77 = vshrl.u32 %v76, 7
    %v78 = vsub.s32 0, %v77
    %v79 = vrot.slane %v74, %v78
    %v89 = vunpack.c.l.b16 %v66
    %v90 = vunpack.c.l.b16 %v67
    %v91 = vunpack.c.l.b16 %v68
    %v92 = vunpack.c.l.b16 %v69
    %v93 = vunpack.c.l.b16 %v70
    %v94 = vunpack.c.l.b16 %v71
    %v95 = vunpack.c.l.b16 %v72
    %v96 = vunpack.c.l.b16 %v73
    %v97 = vpack.c.b16 %v90, %v89
    %v98 = vpack.c.b16 %v92, %v91
    %v99 = vpack.c.b16 %v94, %v93
    %v100 = vpack.c.b16 %v96, %v95
    %vm105 = vcmask 523264
    %v107 = vsel %vm105, %v65, 0
    %109 = vmatprep.subr.bf16.mxu0 0
    %110 = vmatpush1.bf16.msra.mxu0 0
    %111 = vmatprep.subr.bf16.mxu0 0
    %112 = vmatpush1.bf16.msra.mxu0 0
    %113 = vmatprep.subr.bf16.mxu0 0
    %114 = vmatpush1.bf16.msra.mxu0 0
    %115 = vmatprep.subr.bf16.mxu0 0
    %116 = vmatpush1.bf16.msra.mxu0 0
    %117 = vmatprep.subr.bf16.mxu0 0
    %118 = vmatpush1.bf16.msra.mxu0 %v100
    %119 = vmatprep.subr.bf16.mxu0 0
    %120 = vmatpush1.bf16.msra.mxu0 %v99
    %121 = vmatprep.subr.bf16.mxu0 0
    %122 = vmatpush1.bf16.msra.mxu0 %v98
    %123 = vmatprep.subr.bf16.mxu0 0
    %124 = vmatpush1.bf16.msra.mxu0 %v97
    %125 = vmatprep.subr.bf16.mxu0 0
    %126 = vmatpush2.bf16.msra.mxu0 0
    %127 = vmatprep.subr.bf16.mxu0 0
    %128 = vmatpush2.bf16.msra.mxu0 0
    %129 = vmatprep.subr.bf16.mxu0 0
    %130 = vmatpush2.bf16.msra.mxu0 0
    %131 = vmatprep.subr.bf16.mxu0 0
    %132 = vmatpush2.bf16.msra.mxu0 0
    %133 = vmatprep.subr.bf16.mxu0 0
    %134 = vmatpush2.bf16.msra.mxu0 0
    %135 = vmatprep.subr.bf16.mxu0 0
    %136 = vmatpush2.bf16.msra.mxu0 0
    %137 = vmatprep.subr.bf16.mxu0 0
    %138 = vmatpush2.bf16.msra.mxu0 0
    %139 = vmatprep.subr.bf16.mxu0 0
    %140 = vmatpush2.bf16.msra.mxu0 0
    %141 = vmatprep.mubr.bf16.mxu0 0
    %142 = vmatmul.mubr.bf16.gmra.mxu0 %v107
    %v143 = vpop.f32.mrf.mxu0
    %v144 = vadd.f32 %v79, %v143
    %v145 = vpop.f32.mrf.mxu0
    %v146 = vpop.f32.mrf.mxu0
    %v147 = vadd.f32 %v79, %v146
    %v148 = vpop.f32.mrf.mxu0
    %149 = vdwg.mxu0
    %v150 = vmax.f32 %v144, 0.0
    %v151 = vmax.f32 %v147, 0.0
    %v152 = vpack.c.bf16 %v151, %v150
    %v153 = vld [vmem:[#allocation7] sm:$0xf]
    %v154 = vld [vmem:[#allocation7 + $0x4] sm:$0xf]
    %v155 = vld [vmem:[#allocation7 + $0x8] sm:$0xf]
    %v156 = vld [vmem:[#allocation7 + $0xc] sm:$0xf]
    %v157 = vld [vmem:[#allocation7 + $0x10] sm:$0xf]
    %v158 = vld [vmem:[#allocation7 + $0x14] sm:$0xf]
    %v159 = vld [vmem:[#allocation7 + $0x18] sm:$0xf]
    %v160 = vld [vmem:[#allocation7 + $0x1c] sm:$0xf]
    %v161 = vld [vmem:[%s4] sm:$0x1]
    %v163 = vlaneseq
    %v164 = vshrl.u32 %v163, 7
    %v165 = vsub.s32 0, %v164
    %v166 = vrot.slane %v161, %v165
    %v176 = vunpack.c.l.b16 %v153
    %v177 = vunpack.c.l.b16 %v154
    %v178 = vunpack.c.l.b16 %v155
    %v179 = vunpack.c.l.b16 %v156
    %v180 = vunpack.c.l.b16 %v157
    %v181 = vunpack.c.l.b16 %v158
    %v182 = vunpack.c.l.b16 %v159
    %v183 = vunpack.c.l.b16 %v160
    %v184 = vpack.c.b16 %v177, %v176
    %v185 = vpack.c.b16 %v179, %v178
    %v186 = vpack.c.b16 %v181, %v180
    %v187 = vpack.c.b16 %v183, %v182
    %v193 = vsel %vm105, %v152, 0
    %195 = vmatprep.subr.bf16.mxu0 0
    %196 = vmatpush1.bf16.msra.mxu0 0
    %197 = vmatprep.subr.bf16.mxu0 0
    %198 = vmatpush1.bf16.msra.mxu0 0
    %199 = vmatprep.subr.bf16.mxu0 0
    %200 = vmatpush1.bf16.msra.mxu0 0
    %201 = vmatprep.subr.bf16.mxu0 0
    %202 = vmatpush1.bf16.msra.mxu0 0
    %203 = vmatprep.subr.bf16.mxu0 0
    %204 = vmatpush1.bf16.msra.mxu0 %v187
    %205 = vmatprep.subr.bf16.mxu0 0
    %206 = vmatpush1.bf16.msra.mxu0 %v186
    %207 = vmatprep.subr.bf16.mxu0 0
    %208 = vmatpush1.bf16.msra.mxu0 %v185
    %209 = vmatprep.subr.bf16.mxu0 0
    %210 = vmatpush1.bf16.msra.mxu0 %v184
    %211 = vmatprep.subr.bf16.mxu0 0
    %212 = vmatpush2.bf16.msra.mxu0 0
    %213 = vmatprep.subr.bf16.mxu0 0
    %214 = vmatpush2.bf16.msra.mxu0 0
    %215 = vmatprep.subr.bf16.mxu0 0
    %216 = vmatpush2.bf16.msra.mxu0 0
    %217 = vmatprep.subr.bf16.mxu0 0
    %218 = vmatpush2.bf16.msra.mxu0 0
    %219 = vmatprep.subr.bf16.mxu0 0
    %220 = vmatpush2.bf16.msra.mxu0 0
    %221 = vmatprep.subr.bf16.mxu0 0
    %222 = vmatpush2.bf16.msra.mxu0 0
    %223 = vmatprep.subr.bf16.mxu0 0
    %224 = vmatpush2.bf16.msra.mxu0 0
    %225 = vmatprep.subr.bf16.mxu0 0
    %226 = vmatpush2.bf16.msra.mxu0 0
    %227 = vmatprep.mubr.bf16.mxu0 0
    %228 = vmatmul.mubr.bf16.gmra.mxu0 %v193
    %v229 = vpop.f32.mrf.mxu0
    %v230 = vadd.f32 %v166, %v229
    %v231 = vpop.f32.mrf.mxu0
    %v232 = vpop.f32.mrf.mxu0
    %v233 = vadd.f32 %v166, %v232
    %v234 = vpop.f32.mrf.mxu0
    %235 = vdwg.mxu0
    %236 = vst.msk [vmem:[#allocation8] sm:$0xff] %vm105, %v230
    %237 = vst.msk [vmem:[#allocation8 + $0x8] sm:$0xff] %vm105, %v233
    // Predicated region
    $region34: #{_lambda_.1} parent=1 // pred_check
      _
    $region35: #{_lambda_.1} parent=1 // pred_check_branch
      %239 = sbr.rel (0) target = $region37
    $region36: #{_lambda_.1} parent=1 // pred_region
      %s241 = ssub.s32 256, 256
      %242 = vsyncadd [#allocation4], %s241
      %s243 = sshll.u32 [#allocation8], 4
      %s244 = int_to_ptr.vmem [resolvable:$true] %s243
      %249 = dma.vmem_to_hbm [thread:$0]  %s244, 256, %s5, [#allocation4], 128, 128, 8
    $region37: #{_lambda_.1} parent=1 // pred_fallthru
      _
    // Predicated region
    $region38: #{_lambda_.1} parent=1 // pred_check
      _
    $region39: #{_lambda_.1} parent=1 // pred_check_branch
      %251 = sbr.rel (0) target = $region41
    $region40: #{_lambda_.1} parent=1 // pred_region
      %252 = dma.done [#allocation4], 256
    $region41: #{_lambda_.1} parent=1 // pred_fallthru
      _
    %253 = vsyncpa [#allocation3], 1
    %254 = vsyncpa [#allocation6], 1
    %255 = vsyncpa [#allocation4], 1

</llo_original>
